<compile_context>
chip_gen: v6e
topology: v6e:2x2x1
jax: 0.10.0
libtpu: 0.0.40
codegen_flags: <defaults>
</compile_context>

<pallas_src>
import jax
import jax.numpy as jnp
from jax.experimental import pallas as pl
from jax.experimental.pallas import tpu as pltpu

LANES = 128
# Logical layer dims (in, out) of the PyTorch module.
DIMS = [(13, 32), (32, 32), (32, 16), (16, 1)]

# Row offsets inside the packed parameter buffer (rows x 128 lanes, f32):
#   [  0:128) W1 padded, [128:256) W2 padded, [256:384) W3 padded,
#   [384:512) W4 padded, [512:520) biases (row i-1 = b_i, zero padded).
_W_OFF = [0, 128, 256, 384]
_B_OFF = 512
_PACKED_ROWS = 520


def mlp_kernel(x_ref, p_ref, o_ref):
    x = x_ref[...]                                   # (B, 128) f32, lanes >=13 are zero

    w1 = p_ref[_W_OFF[0]:_W_OFF[0] + LANES, :]       # (128, 128) padded weights
    w2 = p_ref[_W_OFF[1]:_W_OFF[1] + LANES, :]
    w3 = p_ref[_W_OFF[2]:_W_OFF[2] + LANES, :]
    w4 = p_ref[_W_OFF[3]:_W_OFF[3] + LANES, :]
    bias_blk = p_ref[_B_OFF:_B_OFF + 8, :]           # (8, 128): rows 0..3 = b1..b4
    b1 = bias_blk[0:1, :]
    b2 = bias_blk[1:2, :]
    b3 = bias_blk[2:3, :]
    b4 = bias_blk[3:4, :]

    h = jnp.maximum(jnp.dot(x, w1, preferred_element_type=jnp.float32) + b1, 0.0)
    h = jnp.maximum(jnp.dot(h, w2, preferred_element_type=jnp.float32) + b2, 0.0)
    h = jnp.maximum(jnp.dot(h, w3, preferred_element_type=jnp.float32) + b3, 0.0)
    # Final linear; output stays (B, 128) lane-dense (cols >= out_dim are exact
    # zeros because W4/b4 padding is zero). Wrapper slices the real columns.
    o_ref[...] = jnp.dot(h, w4, preferred_element_type=jnp.float32) + b4


def pack_params(params):
    """Pack w1..w4 (in,out) and b1..b4 into one (520, 128) f32 VMEM slab."""
    def pad_w(w):
        r, c = w.shape
        return jnp.pad(w, ((0, LANES - r), (0, LANES - c)))

    blocks = [pad_w(params[f"w{i}"]) for i in range(1, 5)]
    bias = jnp.zeros((8, LANES), jnp.float32)
    for i in range(1, 5):
        b = params[f"b{i}"].reshape(-1)
        bias = bias.at[i - 1, :b.shape[0]].set(b)
    blocks.append(bias)
    packed = jnp.concatenate(blocks, axis=0)
    assert packed.shape == (_PACKED_ROWS, LANES)
    return packed


def mlp_forward(x, packed_params):
    """x: (B, input_dim) float32. packed_params: (520, 128) f32 from pack_params."""
    B, d_in = x.shape
    out_dim = DIMS[-1][1]
    x_pad = jnp.pad(x, ((0, 0), (0, LANES - d_in)))  # lane-pad input once, host side

    flops = 2 * B * sum(di * do for di, do in DIMS)
    bytes_accessed = 4 * (x_pad.size + packed_params.size + B * LANES)

    out_pad = pl.pallas_call(
        mlp_kernel,
        out_shape=jax.ShapeDtypeStruct((B, LANES), jnp.float32),
        in_specs=[pl.BlockSpec(memory_space=pltpu.VMEM),
                  pl.BlockSpec(memory_space=pltpu.VMEM)],
        out_specs=pl.BlockSpec(memory_space=pltpu.VMEM),
        cost_estimate=pl.CostEstimate(
            flops=flops, transcendentals=0, bytes_accessed=bytes_accessed),
    )(x_pad, packed_params)

    return out_pad[:, :out_dim]


def init_params(key, input_dim, output_dim):
    """Deterministic init matching nn.Linear shapes (weights stored transposed)."""
    dims = [(input_dim, 32), (32, 32), (32, 16), (16, output_dim)]
    params = {}
    for i, (d_in, d_out) in enumerate(dims, start=1):
        key, kw, kb = jax.random.split(key, 3)
        bound = 1.0 / jnp.sqrt(jnp.float32(d_in))  # PyTorch default uniform bound
        params[f"w{i}"] = jax.random.uniform(
            kw, (d_in, d_out), jnp.float32, minval=-bound, maxval=bound)
        params[f"b{i}"] = jax.random.uniform(
            kb, (1, d_out), jnp.float32, minval=-bound, maxval=bound)
    return params


if __name__ == "__main__":
    key = jax.random.PRNGKey(0)
    k_x, k_p = jax.random.split(key)

    batch = 8
    input_dim = 13   # Boston housing features
    output_dim = 1

    x = jax.random.normal(k_x, (batch, input_dim), dtype=jnp.float32)
    params = init_params(k_p, input_dim, output_dim)
    packed = pack_params(params)

    out = mlp_forward(x, packed)
    out = jax.block_until_ready(out)

    # Reference check in plain JAX (same math, unpacked params).
    h = jnp.maximum(x @ params["w1"] + params["b1"], 0.0)
    h = jnp.maximum(h @ params["w2"] + params["b2"], 0.0)
    h = jnp.maximum(h @ params["w3"] + params["b3"], 0.0)
    ref = h @ params["w4"] + params["b4"]

    assert out.shape == (batch, output_dim)
    assert jnp.allclose(out, ref, atol=1e-5, rtol=1e-5)

    print("KERNEL_OK")
</pallas_src>

<mosaic_0001>
module attributes {stable_mosaic.version = 11 : i64} {
  func.func @mlp_kernel(%arg0: memref<8x128xf32, #tpu.memory_space<vmem>>, %arg1: memref<520x128xf32, #tpu.memory_space<vmem>>, %arg2: memref<8x128xf32, #tpu.memory_space<vmem>>) attributes {dimension_semantics = [], scalar_prefetch = 0 : i64, scratch_operands = 0 : i64, tpu.core_type = #tpu.core_type<tc>} {
    %c0 = arith.constant 0 : index
    %c0_0 = arith.constant 0 : index
    %0 = vector.load %arg0[%c0, %c0_0] : memref<8x128xf32, #tpu.memory_space<vmem>>, vector<8x128xf32>
    %c0_1 = arith.constant 0 : index
    %c0_2 = arith.constant 0 : index
    %1 = vector.load %arg1[%c0_1, %c0_2] : memref<520x128xf32, #tpu.memory_space<vmem>>, vector<128x128xf32>
    %c128 = arith.constant 128 : index
    %c0_3 = arith.constant 0 : index
    %2 = vector.load %arg1[%c128, %c0_3] : memref<520x128xf32, #tpu.memory_space<vmem>>, vector<128x128xf32>
    %c256 = arith.constant 256 : index
    %c0_4 = arith.constant 0 : index
    %3 = vector.load %arg1[%c256, %c0_4] : memref<520x128xf32, #tpu.memory_space<vmem>>, vector<128x128xf32>
    %c384 = arith.constant 384 : index
    %c0_5 = arith.constant 0 : index
    %4 = vector.load %arg1[%c384, %c0_5] : memref<520x128xf32, #tpu.memory_space<vmem>>, vector<128x128xf32>
    %c512 = arith.constant 512 : index
    %c0_6 = arith.constant 0 : index
    %5 = vector.load %arg1[%c512, %c0_6] : memref<520x128xf32, #tpu.memory_space<vmem>>, vector<8x128xf32>
    %6 = vector.extract_strided_slice %5 {offsets = [0, 0], sizes = [1, 128], strides = [1, 1]} : vector<8x128xf32> to vector<1x128xf32>
    %7 = vector.extract_strided_slice %5 {offsets = [1, 0], sizes = [1, 128], strides = [1, 1]} : vector<8x128xf32> to vector<1x128xf32>
    %8 = vector.extract_strided_slice %5 {offsets = [2, 0], sizes = [1, 128], strides = [1, 1]} : vector<8x128xf32> to vector<1x128xf32>
    %9 = vector.extract_strided_slice %5 {offsets = [3, 0], sizes = [1, 128], strides = [1, 1]} : vector<8x128xf32> to vector<1x128xf32>
    %cst = arith.constant dense<0.000000e+00> : vector<8x128xf32>
    %10 = tpu.matmul %0, %1, %cst {dimension_numbers = #tpu.dot_dimension_numbers<[1], [0], [0], [1], [0, 0, 1, 1], [], []>} : vector<8x128xf32>, vector<128x128xf32>, vector<8x128xf32> -> vector<8x128xf32>
    %11 = vector.broadcast %6 : vector<1x128xf32> to vector<8x128xf32>
    %12 = arith.addf %10, %11 : vector<8x128xf32>
    %cst_7 = arith.constant 0.000000e+00 : f32
    %13 = vector.broadcast %cst_7 : f32 to vector<8x128xf32>
    %14 = arith.maximumf %12, %13 : vector<8x128xf32>
    %cst_8 = arith.constant dense<0.000000e+00> : vector<8x128xf32>
    %15 = tpu.matmul %14, %2, %cst_8 {dimension_numbers = #tpu.dot_dimension_numbers<[1], [0], [0], [1], [0, 0, 1, 1], [], []>} : vector<8x128xf32>, vector<128x128xf32>, vector<8x128xf32> -> vector<8x128xf32>
    %16 = vector.broadcast %7 : vector<1x128xf32> to vector<8x128xf32>
    %17 = arith.addf %15, %16 : vector<8x128xf32>
    %cst_9 = arith.constant 0.000000e+00 : f32
    %18 = vector.broadcast %cst_9 : f32 to vector<8x128xf32>
    %19 = arith.maximumf %17, %18 : vector<8x128xf32>
    %cst_10 = arith.constant dense<0.000000e+00> : vector<8x128xf32>
    %20 = tpu.matmul %19, %3, %cst_10 {dimension_numbers = #tpu.dot_dimension_numbers<[1], [0], [0], [1], [0, 0, 1, 1], [], []>} : vector<8x128xf32>, vector<128x128xf32>, vector<8x128xf32> -> vector<8x128xf32>
    %21 = vector.broadcast %8 : vector<1x128xf32> to vector<8x128xf32>
    %22 = arith.addf %20, %21 : vector<8x128xf32>
    %cst_11 = arith.constant 0.000000e+00 : f32
    %23 = vector.broadcast %cst_11 : f32 to vector<8x128xf32>
    %24 = arith.maximumf %22, %23 : vector<8x128xf32>
    %cst_12 = arith.constant dense<0.000000e+00> : vector<8x128xf32>
    %25 = tpu.matmul %24, %4, %cst_12 {dimension_numbers = #tpu.dot_dimension_numbers<[1], [0], [0], [1], [0, 0, 1, 1], [], []>} : vector<8x128xf32>, vector<128x128xf32>, vector<8x128xf32> -> vector<8x128xf32>
    %26 = vector.broadcast %9 : vector<1x128xf32> to vector<8x128xf32>
    %27 = arith.addf %25, %26 : vector<8x128xf32>
    %c0_13 = arith.constant 0 : index
    %c0_14 = arith.constant 0 : index
    %28 = vector.load %arg2[%c0_13, %c0_14] : memref<8x128xf32, #tpu.memory_space<vmem>>, vector<8x128xf32>
    tpu.vector_store %arg2[%c0_13, %c0_14], %27 {strides = array<i32>} : memref<8x128xf32, #tpu.memory_space<vmem>>, vector<8x128xf32>,
    return
  }
}

</mosaic_0001>

<llo_original>
// kernel: tpu_custom_call.1
$region0: #{tpu_custom_call.1}
  #allocation0 [shape = 'u32[]', space=smem, size = 0x4, offset = 0x4, fixed_abs, tag = 'smem constant byte address 0x4 - core index']
  #allocation1 [shape = 'u32[144,128]{1,0:T(1,128)}', space=vmem, size = 0x12000, scoped, tag = 'internal scratch']
  %s0 = inlined_call_operand.hbm [shape: f32[8,128], index: 0, kind: input, shape index: {}]
  %s1 = inlined_call_operand.hbm [shape: f32[520,128], index: 1, kind: input, shape index: {}]
  %s2 = inlined_call_operand.hbm [shape: f32[8,128], index: 2, kind: output, shape index: {}]
  %s3 = sld [smem:[#allocation0]]
  $region26: #{tpu_custom_call.1} parent=0
    _
  %s5 = ssub.s32 1, %s3
  %s6 = scalar_select 0, %s5, %s3
  $region1: #{tpu_custom_call.1} parent=0
    #allocation2 [shape = 'u8[4096]{0}', space=vmem, size = 0x1000, scoped, tag = 'input window, operand 0, single buffered']
    #allocation3 [shape = 's32[1]{0}', space=sflag, size = 0x4, scoped, tag = 'scoped memory for tpu_custom_call.1']
    #allocation4 [shape = 's32[1]{0}', space=sflag, size = 0x4, scoped, tag = 'scoped memory for tpu_custom_call.1']
    #allocation5 [shape = 'u8[266240]{0}', space=vmem, size = 0x41000, scoped, tag = 'input window, operand 1, single buffered']
    #allocation6 [shape = 's32[1]{0}', space=sflag, size = 0x4, scoped, tag = 'scoped memory for tpu_custom_call.1']
    #allocation7 [shape = 'u8[4096]{0}', space=vmem, size = 0x1000, scoped, tag = 'output window, operand 0, single buffered']
    %7 = vsyncpa [#allocation3], 0
    %8 = vsyncpa [#allocation6], 0
    %9 = vsyncpa [#allocation4], 0
    // Predicated region
    $region2: #{tpu_custom_call.1} parent=1 // pred_check
      _
    $region3: #{tpu_custom_call.1} parent=1 // pred_check_branch
      %11 = sbr.rel (0) target = $region5
    $region4: #{tpu_custom_call.1} parent=1 // pred_region
      %s13 = ssub.s32 128, 128
      %14 = vsyncadd [#allocation3], %s13
      %s16 = sshll.u32 [#allocation2], 4
      %s17 = int_to_ptr.vmem [resolvable:$true] %s16
      %19 = dma.hbm_to_vmem [thread:$0]  %s0, 128, %s17, [#allocation3]
    $region5: #{tpu_custom_call.1} parent=1 // pred_fallthru
      _
    // Predicated region
    $region6: #{tpu_custom_call.1} parent=1 // pred_check
      _
    $region7: #{tpu_custom_call.1} parent=1 // pred_check_branch
      %21 = sbr.rel (0) target = $region9
    $region8: #{tpu_custom_call.1} parent=1 // pred_region
      %s23 = ssub.s32 8320, 8320
      %24 = vsyncadd [#allocation6], %s23
      %s25 = sshll.u32 [#allocation5], 4
      %s26 = int_to_ptr.vmem [resolvable:$true] %s25
      %31 = dma.hbm_to_vmem [thread:$0]  %s1, 8320, %s26, [#allocation6], 128, 128, 8
    $region9: #{tpu_custom_call.1} parent=1 // pred_fallthru
      _
    // Predicated region
    $region10: #{tpu_custom_call.1} parent=1 // pred_check
      _
    $region11: #{tpu_custom_call.1} parent=1 // pred_check_branch
      %33 = sbr.rel (0) target = $region13
    $region12: #{tpu_custom_call.1} parent=1 // pred_region
      %34 = dma.done [#allocation3], 128
    $region13: #{tpu_custom_call.1} parent=1 // pred_fallthru
      _
    // Predicated region
    $region14: #{tpu_custom_call.1} parent=1 // pred_check
      _
    $region15: #{tpu_custom_call.1} parent=1 // pred_check_branch
      %36 = sbr.rel (0) target = $region17
    $region16: #{tpu_custom_call.1} parent=1 // pred_region
      %37 = dma.done [#allocation6], 8320
    $region17: #{tpu_custom_call.1} parent=1 // pred_fallthru
      _
    %v38 = vld [vmem:[#allocation2] sm:$0xff]
    %v39 = vld [vmem:[#allocation5] sm:$0xff]
    %v40 = vld [vmem:[#allocation5 + $0x8] sm:$0xff]
    %v41 = vld [vmem:[#allocation5 + $0x10] sm:$0xff]
    %v42 = vld [vmem:[#allocation5 + $0x18] sm:$0xff]
    %v43 = vld [vmem:[#allocation5 + $0x20] sm:$0xff]
    %v44 = vld [vmem:[#allocation5 + $0x28] sm:$0xff]
    %v45 = vld [vmem:[#allocation5 + $0x30] sm:$0xff]
    %v46 = vld [vmem:[#allocation5 + $0x38] sm:$0xff]
    %v47 = vld [vmem:[#allocation5 + $0x40] sm:$0xff]
    %v48 = vld [vmem:[#allocation5 + $0x48] sm:$0xff]
    %v49 = vld [vmem:[#allocation5 + $0x50] sm:$0xff]
    %v50 = vld [vmem:[#allocation5 + $0x58] sm:$0xff]
    %v51 = vld [vmem:[#allocation5 + $0x60] sm:$0xff]
    %v52 = vld [vmem:[#allocation5 + $0x68] sm:$0xff]
    %v53 = vld [vmem:[#allocation5 + $0x70] sm:$0xff]
    %v54 = vld [vmem:[#allocation5 + $0x78] sm:$0xff]
    %v55 = vld [vmem:[#allocation5 + $0x80] sm:$0xff]
    %v56 = vld [vmem:[#allocation5 + $0x88] sm:$0xff]
    %v57 = vld [vmem:[#allocation5 + $0x90] sm:$0xff]
    %v58 = vld [vmem:[#allocation5 + $0x98] sm:$0xff]
    %v59 = vld [vmem:[#allocation5 + $0xa0] sm:$0xff]
    %v60 = vld [vmem:[#allocation5 + $0xa8] sm:$0xff]
    %v61 = vld [vmem:[#allocation5 + $0xb0] sm:$0xff]
    %v62 = vld [vmem:[#allocation5 + $0xb8] sm:$0xff]
    %v63 = vld [vmem:[#allocation5 + $0xc0] sm:$0xff]
    %v64 = vld [vmem:[#allocation5 + $0xc8] sm:$0xff]
    %v65 = vld [vmem:[#allocation5 + $0xd0] sm:$0xff]
    %v66 = vld [vmem:[#allocation5 + $0xd8] sm:$0xff]
    %v67 = vld [vmem:[#allocation5 + $0xe0] sm:$0xff]
    %v68 = vld [vmem:[#allocation5 + $0xe8] sm:$0xff]
    %v69 = vld [vmem:[#allocation5 + $0xf0] sm:$0xff]
    %v70 = vld [vmem:[#allocation5 + $0xf8] sm:$0xff]
    %v71 = vld [vmem:[#allocation5 + $0x100] sm:$0xff]
    %v72 = vld [vmem:[#allocation5 + $0x108] sm:$0xff]
    %v73 = vld [vmem:[#allocation5 + $0x110] sm:$0xff]
    %v74 = vld [vmem:[#allocation5 + $0x118] sm:$0xff]
    %v75 = vld [vmem:[#allocation5 + $0x120] sm:$0xff]
    %v76 = vld [vmem:[#allocation5 + $0x128] sm:$0xff]
    %v77 = vld [vmem:[#allocation5 + $0x130] sm:$0xff]
    %v78 = vld [vmem:[#allocation5 + $0x138] sm:$0xff]
    %v79 = vld [vmem:[#allocation5 + $0x140] sm:$0xff]
    %v80 = vld [vmem:[#allocation5 + $0x148] sm:$0xff]
    %v81 = vld [vmem:[#allocation5 + $0x150] sm:$0xff]
    %v82 = vld [vmem:[#allocation5 + $0x158] sm:$0xff]
    %v83 = vld [vmem:[#allocation5 + $0x160] sm:$0xff]
    %v84 = vld [vmem:[#allocation5 + $0x168] sm:$0xff]
    %v85 = vld [vmem:[#allocation5 + $0x170] sm:$0xff]
    %v86 = vld [vmem:[#allocation5 + $0x178] sm:$0xff]
    %v87 = vld [vmem:[#allocation5 + $0x180] sm:$0xff]
    %v88 = vld [vmem:[#allocation5 + $0x188] sm:$0xff]
    %v89 = vld [vmem:[#allocation5 + $0x190] sm:$0xff]
    %v90 = vld [vmem:[#allocation5 + $0x198] sm:$0xff]
    %v91 = vld [vmem:[#allocation5 + $0x1a0] sm:$0xff]
    %v92 = vld [vmem:[#allocation5 + $0x1a8] sm:$0xff]
    %v93 = vld [vmem:[#allocation5 + $0x1b0] sm:$0xff]
    %v94 = vld [vmem:[#allocation5 + $0x1b8] sm:$0xff]
    %v95 = vld [vmem:[#allocation5 + $0x1c0] sm:$0xff]
    %v96 = vld [vmem:[#allocation5 + $0x1c8] sm:$0xff]
    %v97 = vld [vmem:[#allocation5 + $0x1d0] sm:$0xff]
    %v98 = vld [vmem:[#allocation5 + $0x1d8] sm:$0xff]
    %v99 = vld [vmem:[#allocation5 + $0x1e0] sm:$0xff]
    %v100 = vld [vmem:[#allocation5 + $0x1e8] sm:$0xff]
    %v101 = vld [vmem:[#allocation5 + $0x1f0] sm:$0xff]
    %v102 = vld [vmem:[#allocation5 + $0x1f8] sm:$0xff]
    %v103 = vld [vmem:[#allocation5 + $0x200] sm:$0xff]
    %v104 = vlaneseq
    %v105 = vshrl.u32 %v104, 7
    %v106 = vsub.s32 0, %v105
    %v107 = vrot.slane %v103, %v106
    %108 = vmatprep.subr.mxu0 0.0
    %109 = vmatpush1.msra.mxu0 %v54
    %110 = vmatprep.subr.mxu0 0.0
    %111 = vmatpush1.msra.mxu0 %v53
    %112 = vmatprep.subr.mxu0 0.0
    %113 = vmatpush1.msra.mxu0 %v52
    %114 = vmatprep.subr.mxu0 0.0
    %115 = vmatpush1.msra.mxu0 %v51
    %116 = vmatprep.subr.mxu0 0.0
    %117 = vmatpush1.msra.mxu0 %v50
    %118 = vmatprep.subr.mxu0 0.0
    %119 = vmatpush1.msra.mxu0 %v49
    %120 = vmatprep.subr.mxu0 0.0
    %121 = vmatpush1.msra.mxu0 %v48
    %122 = vmatprep.subr.mxu0 0.0
    %123 = vmatpush1.msra.mxu0 %v47
    %124 = vmatprep.subr.mxu0 0.0
    %125 = vmatpush1.msra.mxu0 %v46
    %126 = vmatprep.subr.mxu0 0.0
    %127 = vmatpush1.msra.mxu0 %v45
    %128 = vmatprep.subr.mxu0 0.0
    %129 = vmatpush1.msra.mxu0 %v44
    %130 = vmatprep.subr.mxu0 0.0
    %131 = vmatpush1.msra.mxu0 %v43
    %132 = vmatprep.subr.mxu0 0.0
    %133 = vmatpush1.msra.mxu0 %v42
    %134 = vmatprep.subr.mxu0 0.0
    %135 = vmatpush1.msra.mxu0 %v41
    %136 = vmatprep.subr.mxu0 0.0
    %137 = vmatpush1.msra.mxu0 %v40
    %138 = vmatprep.subr.mxu0 0.0
    %139 = vmatpush1.msra.mxu0 %v39
    %140 = vmatprep.subr.mxu0 0.0
    %141 = vmatpush2.msra.mxu0 0.0
    %142 = vmatprep.subr.mxu0 0.0
    %143 = vmatpush2.msra.mxu0 0.0
    %144 = vmatprep.subr.mxu0 0.0
    %145 = vmatpush2.msra.mxu0 0.0
    %146 = vmatprep.subr.mxu0 0.0
    %147 = vmatpush2.msra.mxu0 0.0
    %148 = vmatprep.subr.mxu0 0.0
    %149 = vmatpush2.msra.mxu0 0.0
    %150 = vmatprep.subr.mxu0 0.0
    %151 = vmatpush2.msra.mxu0 0.0
    %152 = vmatprep.subr.mxu0 0.0
    %153 = vmatpush2.msra.mxu0 0.0
    %154 = vmatprep.subr.mxu0 0.0
    %155 = vmatpush2.msra.mxu0 0.0
    %156 = vmatprep.subr.mxu0 0.0
    %157 = vmatpush2.msra.mxu0 0.0
    %158 = vmatprep.subr.mxu0 0.0
    %159 = vmatpush2.msra.mxu0 0.0
    %160 = vmatprep.subr.mxu0 0.0
    %161 = vmatpush2.msra.mxu0 0.0
    %162 = vmatprep.subr.mxu0 0.0
    %163 = vmatpush2.msra.mxu0 0.0
    %164 = vmatprep.subr.mxu0 0.0
    %165 = vmatpush2.msra.mxu0 0.0
    %166 = vmatprep.subr.mxu0 0.0
    %167 = vmatpush2.msra.mxu0 0.0
    %168 = vmatprep.subr.mxu0 0.0
    %169 = vmatpush2.msra.mxu0 0.0
    %170 = vmatprep.subr.mxu0 0.0
    %171 = vmatpush2.msra.mxu0 0.0
    %172 = vmatprep.mubr.f32.mxu0 0.0
    %173 = vmatmul.mubr.f32.gmra.mxu0 %v38
    %v174 = vpop.f32.mrf.mxu0
    %v175 = vadd.f32 %v107, %v174
    %v176 = vpop.f32.mrf.mxu0
    %177 = vdwg.mxu0
    %v178 = vmax.f32 %v175, 0.0
    %v179 = vlaneseq
    %v180 = vshrl.u32 %v179, 7
    %v181 = vsub.s32 1, %v180
    %v182 = vrot.slane %v103, %v181
    %183 = vmatprep.subr.mxu0 0.0
    %184 = vmatpush1.msra.mxu0 %v70
    %185 = vmatprep.subr.mxu0 0.0
    %186 = vmatpush1.msra.mxu0 %v69
    %187 = vmatprep.subr.mxu0 0.0
    %188 = vmatpush1.msra.mxu0 %v68
    %189 = vmatprep.subr.mxu0 0.0
    %190 = vmatpush1.msra.mxu0 %v67
    %191 = vmatprep.subr.mxu0 0.0
    %192 = vmatpush1.msra.mxu0 %v66
    %193 = vmatprep.subr.mxu0 0.0
    %194 = vmatpush1.msra.mxu0 %v65
    %195 = vmatprep.subr.mxu0 0.0
    %196 = vmatpush1.msra.mxu0 %v64
    %197 = vmatprep.subr.mxu0 0.0
    %198 = vmatpush1.msra.mxu0 %v63
    %199 = vmatprep.subr.mxu0 0.0
    %200 = vmatpush1.msra.mxu0 %v62
    %201 = vmatprep.subr.mxu0 0.0
    %202 = vmatpush1.msra.mxu0 %v61
    %203 = vmatprep.subr.mxu0 0.0
    %204 = vmatpush1.msra.mxu0 %v60
    %205 = vmatprep.subr.mxu0 0.0
    %206 = vmatpush1.msra.mxu0 %v59
    %207 = vmatprep.subr.mxu0 0.0
    %208 = vmatpush1.msra.mxu0 %v58
    %209 = vmatprep.subr.mxu0 0.0
    %210 = vmatpush1.msra.mxu0 %v57
    %211 = vmatprep.subr.mxu0 0.0
    %212 = vmatpush1.msra.mxu0 %v56
    %213 = vmatprep.subr.mxu0 0.0
    %214 = vmatpush1.msra.mxu0 %v55
    %215 = vmatprep.subr.mxu0 0.0
    %216 = vmatpush2.msra.mxu0 0.0
    %217 = vmatprep.subr.mxu0 0.0
    %218 = vmatpush2.msra.mxu0 0.0
    %219 = vmatprep.subr.mxu0 0.0
    %220 = vmatpush2.msra.mxu0 0.0
    %221 = vmatprep.subr.mxu0 0.0
    %222 = vmatpush2.msra.mxu0 0.0
    %223 = vmatprep.subr.mxu0 0.0
    %224 = vmatpush2.msra.mxu0 0.0
    %225 = vmatprep.subr.mxu0 0.0
    %226 = vmatpush2.msra.mxu0 0.0
    %227 = vmatprep.subr.mxu0 0.0
    %228 = vmatpush2.msra.mxu0 0.0
    %229 = vmatprep.subr.mxu0 0.0
    %230 = vmatpush2.msra.mxu0 0.0
    %231 = vmatprep.subr.mxu0 0.0
    %232 = vmatpush2.msra.mxu0 0.0
    %233 = vmatprep.subr.mxu0 0.0
    %234 = vmatpush2.msra.mxu0 0.0
    %235 = vmatprep.subr.mxu0 0.0
    %236 = vmatpush2.msra.mxu0 0.0
    %237 = vmatprep.subr.mxu0 0.0
    %238 = vmatpush2.msra.mxu0 0.0
    %239 = vmatprep.subr.mxu0 0.0
    %240 = vmatpush2.msra.mxu0 0.0
    %241 = vmatprep.subr.mxu0 0.0
    %242 = vmatpush2.msra.mxu0 0.0
    %243 = vmatprep.subr.mxu0 0.0
    %244 = vmatpush2.msra.mxu0 0.0
    %245 = vmatprep.subr.mxu0 0.0
    %246 = vmatpush2.msra.mxu0 0.0
    %247 = vmatprep.mubr.f32.mxu0 0.0
    %248 = vmatmul.mubr.f32.gmra.mxu0 %v178
    %v249 = vpop.f32.mrf.mxu0
    %v250 = vadd.f32 %v182, %v249
    %v251 = vpop.f32.mrf.mxu0
    %252 = vdwg.mxu0
    %v253 = vmax.f32 %v250, 0.0
    %v254 = vlaneseq
    %v255 = vshrl.u32 %v254, 7
    %v256 = vsub.s32 2, %v255
    %v257 = vrot.slane %v103, %v256
    %258 = vmatprep.subr.mxu0 0.0
    %259 = vmatpush1.msra.mxu0 %v86
    %260 = vmatprep.subr.mxu0 0.0
    %261 = vmatpush1.msra.mxu0 %v85
    %262 = vmatprep.subr.mxu0 0.0
    %263 = vmatpush1.msra.mxu0 %v84
    %264 = vmatprep.subr.mxu0 0.0
    %265 = vmatpush1.msra.mxu0 %v83
    %266 = vmatprep.subr.mxu0 0.0
    %267 = vmatpush1.msra.mxu0 %v82
    %268 = vmatprep.subr.mxu0 0.0
    %269 = vmatpush1.msra.mxu0 %v81
    %270 = vmatprep.subr.mxu0 0.0
    %271 = vmatpush1.msra.mxu0 %v80
    %272 = vmatprep.subr.mxu0 0.0
    %273 = vmatpush1.msra.mxu0 %v79
    %274 = vmatprep.subr.mxu0 0.0
    %275 = vmatpush1.msra.mxu0 %v78
    %276 = vmatprep.subr.mxu0 0.0
    %277 = vmatpush1.msra.mxu0 %v77
    %278 = vmatprep.subr.mxu0 0.0
    %279 = vmatpush1.msra.mxu0 %v76
    %280 = vmatprep.subr.mxu0 0.0
    %281 = vmatpush1.msra.mxu0 %v75
    %282 = vmatprep.subr.mxu0 0.0
    %283 = vmatpush1.msra.mxu0 %v74
    %284 = vmatprep.subr.mxu0 0.0
    %285 = vmatpush1.msra.mxu0 %v73
    %286 = vmatprep.subr.mxu0 0.0
    %287 = vmatpush1.msra.mxu0 %v72
    %288 = vmatprep.subr.mxu0 0.0
    %289 = vmatpush1.msra.mxu0 %v71
    %290 = vmatprep.subr.mxu0 0.0
    %291 = vmatpush2.msra.mxu0 0.0
    %292 = vmatprep.subr.mxu0 0.0
    %293 = vmatpush2.msra.mxu0 0.0
    %294 = vmatprep.subr.mxu0 0.0
    %295 = vmatpush2.msra.mxu0 0.0
    %296 = vmatprep.subr.mxu0 0.0
    %297 = vmatpush2.msra.mxu0 0.0
    %298 = vmatprep.subr.mxu0 0.0
    %299 = vmatpush2.msra.mxu0 0.0
    %300 = vmatprep.subr.mxu0 0.0
    %301 = vmatpush2.msra.mxu0 0.0
    %302 = vmatprep.subr.mxu0 0.0
    %303 = vmatpush2.msra.mxu0 0.0
    %304 = vmatprep.subr.mxu0 0.0
    %305 = vmatpush2.msra.mxu0 0.0
    %306 = vmatprep.subr.mxu0 0.0
    %307 = vmatpush2.msra.mxu0 0.0
    %308 = vmatprep.subr.mxu0 0.0
    %309 = vmatpush2.msra.mxu0 0.0
    %310 = vmatprep.subr.mxu0 0.0
    %311 = vmatpush2.msra.mxu0 0.0
    %312 = vmatprep.subr.mxu0 0.0
    %313 = vmatpush2.msra.mxu0 0.0
    %314 = vmatprep.subr.mxu0 0.0
    %315 = vmatpush2.msra.mxu0 0.0
    %316 = vmatprep.subr.mxu0 0.0
    %317 = vmatpush2.msra.mxu0 0.0
    %318 = vmatprep.subr.mxu0 0.0
    %319 = vmatpush2.msra.mxu0 0.0
    %320 = vmatprep.subr.mxu0 0.0
    %321 = vmatpush2.msra.mxu0 0.0
    %322 = vmatprep.mubr.f32.mxu0 0.0
    %323 = vmatmul.mubr.f32.gmra.mxu0 %v253
    %v324 = vpop.f32.mrf.mxu0
    %v325 = vadd.f32 %v257, %v324
    %v326 = vpop.f32.mrf.mxu0
    %327 = vdwg.mxu0
    %v328 = vmax.f32 %v325, 0.0
    %v329 = vlaneseq
    %v330 = vshrl.u32 %v329, 7
    %v331 = vsub.s32 3, %v330
    %v332 = vrot.slane %v103, %v331
    %333 = vmatprep.subr.mxu0 0.0
    %334 = vmatpush1.msra.mxu0 %v102
    %335 = vmatprep.subr.mxu0 0.0
    %336 = vmatpush1.msra.mxu0 %v101
    %337 = vmatprep.subr.mxu0 0.0
    %338 = vmatpush1.msra.mxu0 %v100
    %339 = vmatprep.subr.mxu0 0.0
    %340 = vmatpush1.msra.mxu0 %v99
    %341 = vmatprep.subr.mxu0 0.0
    %342 = vmatpush1.msra.mxu0 %v98
    %343 = vmatprep.subr.mxu0 0.0
    %344 = vmatpush1.msra.mxu0 %v97
    %345 = vmatprep.subr.mxu0 0.0
    %346 = vmatpush1.msra.mxu0 %v96
    %347 = vmatprep.subr.mxu0 0.0
    %348 = vmatpush1.msra.mxu0 %v95
    %349 = vmatprep.subr.mxu0 0.0
    %350 = vmatpush1.msra.mxu0 %v94
    %351 = vmatprep.subr.mxu0 0.0
    %352 = vmatpush1.msra.mxu0 %v93
    %353 = vmatprep.subr.mxu0 0.0
    %354 = vmatpush1.msra.mxu0 %v92
    %355 = vmatprep.subr.mxu0 0.0
    %356 = vmatpush1.msra.mxu0 %v91
    %357 = vmatprep.subr.mxu0 0.0
    %358 = vmatpush1.msra.mxu0 %v90
    %359 = vmatprep.subr.mxu0 0.0
    %360 = vmatpush1.msra.mxu0 %v89
    %361 = vmatprep.subr.mxu0 0.0
    %362 = vmatpush1.msra.mxu0 %v88
    %363 = vmatprep.subr.mxu0 0.0
    %364 = vmatpush1.msra.mxu0 %v87
    %365 = vmatprep.subr.mxu0 0.0
    %366 = vmatpush2.msra.mxu0 0.0
    %367 = vmatprep.subr.mxu0 0.0
    %368 = vmatpush2.msra.mxu0 0.0
    %369 = vmatprep.subr.mxu0 0.0
    %370 = vmatpush2.msra.mxu0 0.0
    %371 = vmatprep.subr.mxu0 0.0
    %372 = vmatpush2.msra.mxu0 0.0
    %373 = vmatprep.subr.mxu0 0.0
    %374 = vmatpush2.msra.mxu0 0.0
    %375 = vmatprep.subr.mxu0 0.0
    %376 = vmatpush2.msra.mxu0 0.0
    %377 = vmatprep.subr.mxu0 0.0
    %378 = vmatpush2.msra.mxu0 0.0
    %379 = vmatprep.subr.mxu0 0.0
    %380 = vmatpush2.msra.mxu0 0.0
    %381 = vmatprep.subr.mxu0 0.0
    %382 = vmatpush2.msra.mxu0 0.0
    %383 = vmatprep.subr.mxu0 0.0
    %384 = vmatpush2.msra.mxu0 0.0
    %385 = vmatprep.subr.mxu0 0.0
    %386 = vmatpush2.msra.mxu0 0.0
    %387 = vmatprep.subr.mxu0 0.0
    %388 = vmatpush2.msra.mxu0 0.0
    %389 = vmatprep.subr.mxu0 0.0
    %390 = vmatpush2.msra.mxu0 0.0
    %391 = vmatprep.subr.mxu0 0.0
    %392 = vmatpush2.msra.mxu0 0.0
    %393 = vmatprep.subr.mxu0 0.0
    %394 = vmatpush2.msra.mxu0 0.0
    %395 = vmatprep.subr.mxu0 0.0
    %396 = vmatpush2.msra.mxu0 0.0
    %397 = vmatprep.mubr.f32.mxu0 0.0
    %398 = vmatmul.mubr.f32.gmra.mxu0 %v328
    %v399 = vpop.f32.mrf.mxu0
    %v400 = vadd.f32 %v332, %v399
    %v401 = vpop.f32.mrf.mxu0
    %402 = vdwg.mxu0
    %403 = vst [vmem:[#allocation7] sm:$0xff] %v400
    // Predicated region
    $region18: #{tpu_custom_call.1} parent=1 // pred_check
      _
    $region19: #{tpu_custom_call.1} parent=1 // pred_check_branch
      %405 = sbr.rel (0) target = $region21
    $region20: #{tpu_custom_call.1} parent=1 // pred_region
      %s407 = ssub.s32 128, 128
      %408 = vsyncadd [#allocation4], %s407
      %s410 = sshll.u32 [#allocation7], 4
      %s411 = int_to_ptr.vmem [resolvable:$true] %s410
      %413 = dma.vmem_to_hbm [thread:$0]  %s411, 128, %s2, [#allocation4]
    $region21: #{tpu_custom_call.1} parent=1 // pred_fallthru
      _
    // Predicated region
    $region22: #{tpu_custom_call.1} parent=1 // pred_check
      _
    $region23: #{tpu_custom_call.1} parent=1 // pred_check_branch
      %415 = sbr.rel (0) target = $region25
    $region24: #{tpu_custom_call.1} parent=1 // pred_region
      %416 = dma.done [#allocation4], 128
    $region25: #{tpu_custom_call.1} parent=1 // pred_fallthru
      _
    %417 = vsyncpa [#allocation3], 1
    %418 = vsyncpa [#allocation6], 1
    %419 = vsyncpa [#allocation4], 1

</llo_original>
